<compile_context>
chip_gen: v7x
topology: tpu7x:2x2x1
jax: 0.10.0
libtpu: 0.0.40
codegen_flags: <defaults>
</compile_context>

<pallas_src>
import functools

import jax
import jax.numpy as jnp
from jax.experimental import pallas as pl
from jax.experimental.pallas import tpu as pltpu

embed_dim = 10
corpus = 'I love natural language processing and I love deep learning'.lower().split()
vocab = sorted(set(corpus))          # sorted -> deterministic ordering
vocab_size = len(vocab)
word2idx = {w: i for i, w in enumerate(vocab)}

_SUBLANE = 8
_LANE = 128


def _round_up(x, m):
    return ((x + m - 1) // m) * m


def _skipgram_kernel(cids_ref, xids_ref, in_ref, out_ref, w_ref, loss_ref,
                     cvec_ref, xvec_ref, acc_ref, *, tb):
    i = pl.program_id(0)
    base = i * tb

    @pl.when(i == 0)
    def _init():
        acc_ref[...] = jnp.zeros_like(acc_ref)

    # Gather TB rows from each VMEM-resident padded table into (TB, d_pad)
    # scratch.  Ids live in SMEM (scalar prefetch); destinations are static
    # sublane offsets, sources are dynamic sublane slices.  Ids >= V would
    # silently read zero-padded rows (wrapper guarantees ids < V).
    for b in range(tb):
        c = cids_ref[base + b]
        x = xids_ref[base + b]
        cvec_ref[pl.ds(b, 1), :] = in_ref[pl.ds(c, 1), :].astype(jnp.float32)
        xvec_ref[pl.ds(b, 1), :] = out_ref[pl.ds(x, 1), :].astype(jnp.float32)

    # Vectorized over the whole tile: elementwise product (VPU), lane reduce
    # (XLU), softplus (EUP).  Padded lanes are zero -> contribute 0 to score.
    prod = cvec_ref[...] * xvec_ref[...]                       # (TB, d_pad)
    score = jnp.sum(prod, axis=1, keepdims=True)               # (TB, 1)
    # -log(sigmoid(s)) == softplus(-s), stable form (no log(0) for large |s|).
    losses = jnp.maximum(-score, 0.0) + jnp.log(1.0 + jnp.exp(-jnp.abs(score)))
    # w = 1/B for real pairs, 0 for batch padding -> masking + mean in one mul.
    acc_ref[...] += jnp.sum(losses * w_ref[...], keepdims=True)

    @pl.when(i == pl.num_programs(0) - 1)
    def _finalize():
        loss_ref[...] = acc_ref[...]


def skipgram_loss(center_ids, context_ids, input_embed, output_embed):
    """center/context ids: int (B,); embeds: (V, D). Returns scalar loss."""
    V, D = input_embed.shape
    B = int(center_ids.shape[0])

    d_pad = _round_up(D, _LANE)
    v_pad = _round_up(V, _SUBLANE)

    # TB (center, context) pairs per grid step.  At the test size this is a
    # single step; cap TB so the unrolled gather loop stays small.
    tb = min(_round_up(B, _SUBLANE), 64)
    b_pad = _round_up(B, tb)
    nb = b_pad // tb

    def pad_table(t):
        # Zero padding: padded lanes contribute 0 to the dot product; padded
        # rows are never indexed (ids < V).  Keep the caller's dtype.
        return jnp.zeros((v_pad, d_pad), t.dtype).at[:V, :D].set(t)

    in_pad = pad_table(input_embed)
    out_pad = pad_table(output_embed)

    def pad_ids(ids):
        ids = ids.astype(jnp.int32)
        return jnp.zeros((b_pad,), jnp.int32).at[:B].set(ids)

    cids = pad_ids(center_ids)
    xids = pad_ids(context_ids)

    # Per-pair weight: 1/B for real pairs, 0 for batch padding.
    weights = jnp.zeros((b_pad, 1), jnp.float32).at[:B, :].set(1.0 / B)

    grid_spec = pltpu.PrefetchScalarGridSpec(
        num_scalar_prefetch=2,                 # cids, xids land in SMEM
        grid=(nb,),
        in_specs=[
            # Full padded tables, constant block index -> DMA'd once, then
            # VMEM-resident across all grid steps.
            pl.BlockSpec((v_pad, d_pad), lambda i, c, x: (0, 0)),
            pl.BlockSpec((v_pad, d_pad), lambda i, c, x: (0, 0)),
            # Per-step slab of pair weights.
            pl.BlockSpec((tb, 1), lambda i, c, x: (i, 0)),
        ],
        # Same (1,1) output block every step -> written to HBM once.
        out_specs=pl.BlockSpec((1, 1), lambda i, c, x: (0, 0)),
        scratch_shapes=[
            pltpu.VMEM((tb, d_pad), jnp.float32),   # gathered center rows
            pltpu.VMEM((tb, d_pad), jnp.float32),   # gathered context rows
            pltpu.VMEM((1, 1), jnp.float32),        # loss accumulator
        ],
    )

    out = pl.pallas_call(
        functools.partial(_skipgram_kernel, tb=tb),
        out_shape=jax.ShapeDtypeStruct((1, 1), jnp.float32),
        grid_spec=grid_spec,
        compiler_params=pltpu.CompilerParams(
            # Batch axis reduces into the scalar loss -> "arbitrary".
            dimension_semantics=("arbitrary",),
        ),
    )(cids, xids, in_pad, out_pad, weights)
    return out[0, 0]


def skipgram_loss_ref(center_ids, context_ids, input_embed, output_embed):
    center_vec = input_embed[center_ids]
    context_vec = output_embed[context_ids]
    score = jnp.sum(center_vec * context_vec, axis=1)
    return -jnp.mean(jnp.log(jax.nn.sigmoid(score)))


if __name__ == "__main__":
    key = jax.random.PRNGKey(0)
    k_in, k_out = jax.random.split(key)

    # nn.Embedding default init ~ N(0, 1)
    input_embed = jax.random.normal(k_in, (vocab_size, embed_dim), dtype=jnp.float32)
    output_embed = jax.random.normal(k_out, (vocab_size, embed_dim), dtype=jnp.float32)

    # Build (center, context) pairs with window size 1 from the corpus.
    centers, contexts = [], []
    for i, w in enumerate(corpus):
        for j in (i - 1, i + 1):
            if 0 <= j < len(corpus):
                centers.append(word2idx[w])
                contexts.append(word2idx[corpus[j]])
    B = 8
    center_ids = jnp.asarray(centers[:B], dtype=jnp.int32)
    context_ids = jnp.asarray(contexts[:B], dtype=jnp.int32)

    loss = skipgram_loss(center_ids, context_ids, input_embed, output_embed)
    loss = jax.block_until_ready(loss)

    ref = skipgram_loss_ref(center_ids, context_ids, input_embed, output_embed)
    assert jnp.allclose(loss, ref, rtol=1e-5, atol=1e-5), (loss, ref)

    print("KERNEL_OK")
</pallas_src>

<mosaic_0001>
module attributes {stable_mosaic.version = 11 : i64} {
  func.func @_skipgram_kernel(%arg0: i32, %arg1: memref<8xi32, #tpu.memory_space<smem>>, %arg2: memref<8xi32, #tpu.memory_space<smem>>, %arg3: memref<8x128xf32, #tpu.memory_space<vmem>>, %arg4: memref<8x128xf32, #tpu.memory_space<vmem>>, %arg5: memref<8x1xf32, #tpu.memory_space<vmem>>, %arg6: memref<1x1xf32, #tpu.memory_space<vmem>>, %arg7: memref<8x128xf32, #tpu.memory_space<vmem>>, %arg8: memref<8x128xf32, #tpu.memory_space<vmem>>, %arg9: memref<1x1xf32, #tpu.memory_space<vmem>>) attributes {dimension_semantics = [#tpu.dimension_semantics<arbitrary>], iteration_bounds = array<i64: 1>, scalar_prefetch = 2 : i64, scratch_operands = 3 : i64, tpu.core_type = #tpu.core_type<tc>, window_params = [{pipeline_mode = #tpu.pipeline_mode<synchronous>, transform_indices = @transform_0, window_bounds = array<i64: 8, 128>}, {pipeline_mode = #tpu.pipeline_mode<synchronous>, transform_indices = @transform_1, window_bounds = array<i64: 8, 128>}, {transform_indices = @transform_2, window_bounds = array<i64: 8, 1>}, {pipeline_mode = #tpu.pipeline_mode<synchronous>, transform_indices = @transform_3, window_bounds = array<i64: 1, 1>}]} {
    %c8_i32 = arith.constant 8 : i32
    %0 = arith.muli %arg0, %c8_i32 : i32
    %c0_i32 = arith.constant 0 : i32
    %1 = arith.cmpi eq, %arg0, %c0_i32 : i32
    %2 = arith.extui %1 : i1 to i32
    %c0_i32_0 = arith.constant 0 : i32
    %3 = arith.cmpi ne, %2, %c0_i32_0 : i32
    scf.if %3 {
      %cst_67 = arith.constant 0.000000e+00 : f32
      %130 = vector.broadcast %cst_67 : f32 to vector<1x1xf32>
      %c0_68 = arith.constant 0 : index
      %c0_69 = arith.constant 0 : index
      %131 = vector.load %arg9[%c0_68, %c0_69] : memref<1x1xf32, #tpu.memory_space<vmem>>, vector<1x1xf32>
      tpu.vector_store %arg9[%c0_68, %c0_69], %130 {strides = array<i32>} : memref<1x1xf32, #tpu.memory_space<vmem>>, vector<1x1xf32>,
    } else {
    }
    %c0_i32_1 = arith.constant 0 : i32
    %4 = arith.addi %0, %c0_i32_1 : i32
    %5 = arith.index_cast %4 : i32 to index
    %6 = memref.load %arg1[%5] : memref<8xi32, #tpu.memory_space<smem>>
    %c0_i32_2 = arith.constant 0 : i32
    %7 = arith.addi %0, %c0_i32_2 : i32
    %8 = arith.index_cast %7 : i32 to index
    %9 = memref.load %arg2[%8] : memref<8xi32, #tpu.memory_space<smem>>
    %10 = arith.index_cast %6 : i32 to index
    %c0 = arith.constant 0 : index
    %11 = vector.load %arg3[%10, %c0] : memref<8x128xf32, #tpu.memory_space<vmem>>, vector<1x128xf32>
    %c0_3 = arith.constant 0 : index
    %c0_4 = arith.constant 0 : index
    %12 = vector.load %arg7[%c0_3, %c0_4] : memref<8x128xf32, #tpu.memory_space<vmem>>, vector<1x128xf32>
    tpu.vector_store %arg7[%c0_3, %c0_4], %11 {strides = array<i32>} : memref<8x128xf32, #tpu.memory_space<vmem>>, vector<1x128xf32>,
    %13 = arith.index_cast %9 : i32 to index
    %c0_5 = arith.constant 0 : index
    %14 = vector.load %arg4[%13, %c0_5] : memref<8x128xf32, #tpu.memory_space<vmem>>, vector<1x128xf32>
    %c0_6 = arith.constant 0 : index
    %c0_7 = arith.constant 0 : index
    %15 = vector.load %arg8[%c0_6, %c0_7] : memref<8x128xf32, #tpu.memory_space<vmem>>, vector<1x128xf32>
    tpu.vector_store %arg8[%c0_6, %c0_7], %14 {strides = array<i32>} : memref<8x128xf32, #tpu.memory_space<vmem>>, vector<1x128xf32>,
    %c1_i32 = arith.constant 1 : i32
    %16 = arith.addi %0, %c1_i32 : i32
    %17 = arith.index_cast %16 : i32 to index
    %18 = memref.load %arg1[%17] : memref<8xi32, #tpu.memory_space<smem>>
    %c1_i32_8 = arith.constant 1 : i32
    %19 = arith.addi %0, %c1_i32_8 : i32
    %20 = arith.index_cast %19 : i32 to index
    %21 = memref.load %arg2[%20] : memref<8xi32, #tpu.memory_space<smem>>
    %22 = arith.index_cast %18 : i32 to index
    %c0_9 = arith.constant 0 : index
    %23 = vector.load %arg3[%22, %c0_9] : memref<8x128xf32, #tpu.memory_space<vmem>>, vector<1x128xf32>
    %c1 = arith.constant 1 : index
    %c0_10 = arith.constant 0 : index
    %24 = vector.load %arg7[%c1, %c0_10] : memref<8x128xf32, #tpu.memory_space<vmem>>, vector<1x128xf32>
    tpu.vector_store %arg7[%c1, %c0_10], %23 {strides = array<i32>} : memref<8x128xf32, #tpu.memory_space<vmem>>, vector<1x128xf32>,
    %25 = arith.index_cast %21 : i32 to index
    %c0_11 = arith.constant 0 : index
    %26 = vector.load %arg4[%25, %c0_11] : memref<8x128xf32, #tpu.memory_space<vmem>>, vector<1x128xf32>
    %c1_12 = arith.constant 1 : index
    %c0_13 = arith.constant 0 : index
    %27 = vector.load %arg8[%c1_12, %c0_13] : memref<8x128xf32, #tpu.memory_space<vmem>>, vector<1x128xf32>
    tpu.vector_store %arg8[%c1_12, %c0_13], %26 {strides = array<i32>} : memref<8x128xf32, #tpu.memory_space<vmem>>, vector<1x128xf32>,
    %c2_i32 = arith.constant 2 : i32
    %28 = arith.addi %0, %c2_i32 : i32
    %29 = arith.index_cast %28 : i32 to index
    %30 = memref.load %arg1[%29] : memref<8xi32, #tpu.memory_space<smem>>
    %c2_i32_14 = arith.constant 2 : i32
    %31 = arith.addi %0, %c2_i32_14 : i32
    %32 = arith.index_cast %31 : i32 to index
    %33 = memref.load %arg2[%32] : memref<8xi32, #tpu.memory_space<smem>>
    %34 = arith.index_cast %30 : i32 to index
    %c0_15 = arith.constant 0 : index
    %35 = vector.load %arg3[%34, %c0_15] : memref<8x128xf32, #tpu.memory_space<vmem>>, vector<1x128xf32>
    %c2 = arith.constant 2 : index
    %c0_16 = arith.constant 0 : index
    %36 = vector.load %arg7[%c2, %c0_16] : memref<8x128xf32, #tpu.memory_space<vmem>>, vector<1x128xf32>
    tpu.vector_store %arg7[%c2, %c0_16], %35 {strides = array<i32>} : memref<8x128xf32, #tpu.memory_space<vmem>>, vector<1x128xf32>,
    %37 = arith.index_cast %33 : i32 to index
    %c0_17 = arith.constant 0 : index
    %38 = vector.load %arg4[%37, %c0_17] : memref<8x128xf32, #tpu.memory_space<vmem>>, vector<1x128xf32>
    %c2_18 = arith.constant 2 : index
    %c0_19 = arith.constant 0 : index
    %39 = vector.load %arg8[%c2_18, %c0_19] : memref<8x128xf32, #tpu.memory_space<vmem>>, vector<1x128xf32>
    tpu.vector_store %arg8[%c2_18, %c0_19], %38 {strides = array<i32>} : memref<8x128xf32, #tpu.memory_space<vmem>>, vector<1x128xf32>,
    %c3_i32 = arith.constant 3 : i32
    %40 = arith.addi %0, %c3_i32 : i32
    %41 = arith.index_cast %40 : i32 to index
    %42 = memref.load %arg1[%41] : memref<8xi32, #tpu.memory_space<smem>>
    %c3_i32_20 = arith.constant 3 : i32
    %43 = arith.addi %0, %c3_i32_20 : i32
    %44 = arith.index_cast %43 : i32 to index
    %45 = memref.load %arg2[%44] : memref<8xi32, #tpu.memory_space<smem>>
    %46 = arith.index_cast %42 : i32 to index
    %c0_21 = arith.constant 0 : index
    %47 = vector.load %arg3[%46, %c0_21] : memref<8x128xf32, #tpu.memory_space<vmem>>, vector<1x128xf32>
    %c3 = arith.constant 3 : index
    %c0_22 = arith.constant 0 : index
    %48 = vector.load %arg7[%c3, %c0_22] : memref<8x128xf32, #tpu.memory_space<vmem>>, vector<1x128xf32>
    tpu.vector_store %arg7[%c3, %c0_22], %47 {strides = array<i32>} : memref<8x128xf32, #tpu.memory_space<vmem>>, vector<1x128xf32>,
    %49 = arith.index_cast %45 : i32 to index
    %c0_23 = arith.constant 0 : index
    %50 = vector.load %arg4[%49, %c0_23] : memref<8x128xf32, #tpu.memory_space<vmem>>, vector<1x128xf32>
    %c3_24 = arith.constant 3 : index
    %c0_25 = arith.constant 0 : index
    %51 = vector.load %arg8[%c3_24, %c0_25] : memref<8x128xf32, #tpu.memory_space<vmem>>, vector<1x128xf32>
    tpu.vector_store %arg8[%c3_24, %c0_25], %50 {strides = array<i32>} : memref<8x128xf32, #tpu.memory_space<vmem>>, vector<1x128xf32>,
    %c4_i32 = arith.constant 4 : i32
    %52 = arith.addi %0, %c4_i32 : i32
    %53 = arith.index_cast %52 : i32 to index
    %54 = memref.load %arg1[%53] : memref<8xi32, #tpu.memory_space<smem>>
    %c4_i32_26 = arith.constant 4 : i32
    %55 = arith.addi %0, %c4_i32_26 : i32
    %56 = arith.index_cast %55 : i32 to index
    %57 = memref.load %arg2[%56] : memref<8xi32, #tpu.memory_space<smem>>
    %58 = arith.index_cast %54 : i32 to index
    %c0_27 = arith.constant 0 : index
    %59 = vector.load %arg3[%58, %c0_27] : memref<8x128xf32, #tpu.memory_space<vmem>>, vector<1x128xf32>
    %c4 = arith.constant 4 : index
    %c0_28 = arith.constant 0 : index
    %60 = vector.load %arg7[%c4, %c0_28] : memref<8x128xf32, #tpu.memory_space<vmem>>, vector<1x128xf32>
    tpu.vector_store %arg7[%c4, %c0_28], %59 {strides = array<i32>} : memref<8x128xf32, #tpu.memory_space<vmem>>, vector<1x128xf32>,
    %61 = arith.index_cast %57 : i32 to index
    %c0_29 = arith.constant 0 : index
    %62 = vector.load %arg4[%61, %c0_29] : memref<8x128xf32, #tpu.memory_space<vmem>>, vector<1x128xf32>
    %c4_30 = arith.constant 4 : index
    %c0_31 = arith.constant 0 : index
    %63 = vector.load %arg8[%c4_30, %c0_31] : memref<8x128xf32, #tpu.memory_space<vmem>>, vector<1x128xf32>
    tpu.vector_store %arg8[%c4_30, %c0_31], %62 {strides = array<i32>} : memref<8x128xf32, #tpu.memory_space<vmem>>, vector<1x128xf32>,
    %c5_i32 = arith.constant 5 : i32
    %64 = arith.addi %0, %c5_i32 : i32
    %65 = arith.index_cast %64 : i32 to index
    %66 = memref.load %arg1[%65] : memref<8xi32, #tpu.memory_space<smem>>
    %c5_i32_32 = arith.constant 5 : i32
    %67 = arith.addi %0, %c5_i32_32 : i32
    %68 = arith.index_cast %67 : i32 to index
    %69 = memref.load %arg2[%68] : memref<8xi32, #tpu.memory_space<smem>>
    %70 = arith.index_cast %66 : i32 to index
    %c0_33 = arith.constant 0 : index
    %71 = vector.load %arg3[%70, %c0_33] : memref<8x128xf32, #tpu.memory_space<vmem>>, vector<1x128xf32>
    %c5 = arith.constant 5 : index
    %c0_34 = arith.constant 0 : index
    %72 = vector.load %arg7[%c5, %c0_34] : memref<8x128xf32, #tpu.memory_space<vmem>>, vector<1x128xf32>
    tpu.vector_store %arg7[%c5, %c0_34], %71 {strides = array<i32>} : memref<8x128xf32, #tpu.memory_space<vmem>>, vector<1x128xf32>,
    %73 = arith.index_cast %69 : i32 to index
    %c0_35 = arith.constant 0 : index
    %74 = vector.load %arg4[%73, %c0_35] : memref<8x128xf32, #tpu.memory_space<vmem>>, vector<1x128xf32>
    %c5_36 = arith.constant 5 : index
    %c0_37 = arith.constant 0 : index
    %75 = vector.load %arg8[%c5_36, %c0_37] : memref<8x128xf32, #tpu.memory_space<vmem>>, vector<1x128xf32>
    tpu.vector_store %arg8[%c5_36, %c0_37], %74 {strides = array<i32>} : memref<8x128xf32, #tpu.memory_space<vmem>>, vector<1x128xf32>,
    %c6_i32 = arith.constant 6 : i32
    %76 = arith.addi %0, %c6_i32 : i32
    %77 = arith.index_cast %76 : i32 to index
    %78 = memref.load %arg1[%77] : memref<8xi32, #tpu.memory_space<smem>>
    %c6_i32_38 = arith.constant 6 : i32
    %79 = arith.addi %0, %c6_i32_38 : i32
    %80 = arith.index_cast %79 : i32 to index
    %81 = memref.load %arg2[%80] : memref<8xi32, #tpu.memory_space<smem>>
    %82 = arith.index_cast %78 : i32 to index
    %c0_39 = arith.constant 0 : index
    %83 = vector.load %arg3[%82, %c0_39] : memref<8x128xf32, #tpu.memory_space<vmem>>, vector<1x128xf32>
    %c6 = arith.constant 6 : index
    %c0_40 = arith.constant 0 : index
    %84 = vector.load %arg7[%c6, %c0_40] : memref<8x128xf32, #tpu.memory_space<vmem>>, vector<1x128xf32>
    tpu.vector_store %arg7[%c6, %c0_40], %83 {strides = array<i32>} : memref<8x128xf32, #tpu.memory_space<vmem>>, vector<1x128xf32>,
    %85 = arith.index_cast %81 : i32 to index
    %c0_41 = arith.constant 0 : index
    %86 = vector.load %arg4[%85, %c0_41] : memref<8x128xf32, #tpu.memory_space<vmem>>, vector<1x128xf32>
    %c6_42 = arith.constant 6 : index
    %c0_43 = arith.constant 0 : index
    %87 = vector.load %arg8[%c6_42, %c0_43] : memref<8x128xf32, #tpu.memory_space<vmem>>, vector<1x128xf32>
    tpu.vector_store %arg8[%c6_42, %c0_43], %86 {strides = array<i32>} : memref<8x128xf32, #tpu.memory_space<vmem>>, vector<1x128xf32>,
    %c7_i32 = arith.constant 7 : i32
    %88 = arith.addi %0, %c7_i32 : i32
    %89 = arith.index_cast %88 : i32 to index
    %90 = memref.load %arg1[%89] : memref<8xi32, #tpu.memory_space<smem>>
    %c7_i32_44 = arith.constant 7 : i32
    %91 = arith.addi %0, %c7_i32_44 : i32
    %92 = arith.index_cast %91 : i32 to index
    %93 = memref.load %arg2[%92] : memref<8xi32, #tpu.memory_space<smem>>
    %94 = arith.index_cast %90 : i32 to index
    %c0_45 = arith.constant 0 : index
    %95 = vector.load %arg3[%94, %c0_45] : memref<8x128xf32, #tpu.memory_space<vmem>>, vector<1x128xf32>
    %c7 = arith.constant 7 : index
    %c0_46 = arith.constant 0 : index
    %96 = vector.load %arg7[%c7, %c0_46] : memref<8x128xf32, #tpu.memory_space<vmem>>, vector<1x128xf32>
    tpu.vector_store %arg7[%c7, %c0_46], %95 {strides = array<i32>} : memref<8x128xf32, #tpu.memory_space<vmem>>, vector<1x128xf32>,
    %97 = arith.index_cast %93 : i32 to index
    %c0_47 = arith.constant 0 : index
    %98 = vector.load %arg4[%97, %c0_47] : memref<8x128xf32, #tpu.memory_space<vmem>>, vector<1x128xf32>
    %c7_48 = arith.constant 7 : index
    %c0_49 = arith.constant 0 : index
    %99 = vector.load %arg8[%c7_48, %c0_49] : memref<8x128xf32, #tpu.memory_space<vmem>>, vector<1x128xf32>
    tpu.vector_store %arg8[%c7_48, %c0_49], %98 {strides = array<i32>} : memref<8x128xf32, #tpu.memory_space<vmem>>, vector<1x128xf32>,
    %c0_50 = arith.constant 0 : index
    %c0_51 = arith.constant 0 : index
    %100 = vector.load %arg7[%c0_50, %c0_51] : memref<8x128xf32, #tpu.memory_space<vmem>>, vector<8x128xf32>
    %c0_52 = arith.constant 0 : index
    %c0_53 = arith.constant 0 : index
    %101 = vector.load %arg8[%c0_52, %c0_53] : memref<8x128xf32, #tpu.memory_space<vmem>>, vector<8x128xf32>
    %102 = arith.mulf %100, %101 : vector<8x128xf32>
    %cst = arith.constant dense<0.000000e+00> : vector<8xf32>
    %103 = vector.multi_reduction <add>, %102, %cst [1] : vector<8x128xf32> to vector<8xf32>
    %104 = vector.shape_cast %103 : vector<8xf32> to vector<8x1xf32>
    %cst_54 = arith.constant 0.000000e+00 : f32
    %105 = vector.broadcast %cst_54 : f32 to vector<8x1xf32>
    %106 = arith.subf %105, %104 : vector<8x1xf32>
    %cst_55 = arith.constant 0.000000e+00 : f32
    %107 = vector.broadcast %cst_55 : f32 to vector<8x1xf32>
    %108 = arith.maximumf %106, %107 : vector<8x1xf32>
    %109 = math.absf %104 : vector<8x1xf32>
    %cst_56 = arith.constant 0.000000e+00 : f32
    %110 = vector.broadcast %cst_56 : f32 to vector<8x1xf32>
    %111 = arith.subf %110, %109 : vector<8x1xf32>
    %112 = math.exp %111 : vector<8x1xf32>
    %cst_57 = arith.constant 1.000000e+00 : f32
    %113 = vector.broadcast %cst_57 : f32 to vector<8x1xf32>
    %114 = arith.addf %113, %112 : vector<8x1xf32>
    %115 = math.log %114 : vector<8x1xf32>
    %116 = arith.addf %108, %115 : vector<8x1xf32>
    %c0_58 = arith.constant 0 : index
    %c0_59 = arith.constant 0 : index
    %117 = vector.load %arg9[%c0_58, %c0_59] : memref<1x1xf32, #tpu.memory_space<vmem>>, vector<1x1xf32>
    %c0_60 = arith.constant 0 : index
    %c0_61 = arith.constant 0 : index
    %118 = vector.load %arg5[%c0_60, %c0_61] : memref<8x1xf32, #tpu.memory_space<vmem>>, vector<8x1xf32>
    %119 = arith.mulf %116, %118 : vector<8x1xf32>
    %120 = vector.shape_cast %119 : vector<8x1xf32> to vector<1x8x1xf32>
    %cst_62 = arith.constant dense<0.000000e+00> : vector<1xf32>
    %121 = vector.multi_reduction <add>, %120, %cst_62 [1, 2] : vector<1x8x1xf32> to vector<1xf32>
    %122 = vector.shape_cast %121 : vector<1xf32> to vector<1x1x1xf32>
    %123 = vector.extract %122[0, 0, 0] : f32 from vector<1x1x1xf32>
    %124 = vector.broadcast %123 : f32 to vector<1x1xf32>
    %125 = arith.addf %117, %124 : vector<1x1xf32>
    %c0_63 = arith.constant 0 : index
    %c0_64 = arith.constant 0 : index
    %126 = vector.load %arg9[%c0_63, %c0_64] : memref<1x1xf32, #tpu.memory_space<vmem>>, vector<1x1xf32>
    tpu.vector_store %arg9[%c0_63, %c0_64], %125 {strides = array<i32>} : memref<1x1xf32, #tpu.memory_space<vmem>>, vector<1x1xf32>,
    %c0_i32_65 = arith.constant 0 : i32
    %127 = arith.cmpi eq, %arg0, %c0_i32_65 : i32
    %128 = arith.extui %127 : i1 to i32
    %c0_i32_66 = arith.constant 0 : i32
    %129 = arith.cmpi ne, %128, %c0_i32_66 : i32
    scf.if %129 {
      %c0_67 = arith.constant 0 : index
      %c0_68 = arith.constant 0 : index
      %130 = vector.load %arg9[%c0_67, %c0_68] : memref<1x1xf32, #tpu.memory_space<vmem>>, vector<1x1xf32>
      %c0_69 = arith.constant 0 : index
      %c0_70 = arith.constant 0 : index
      %131 = vector.load %arg6[%c0_69, %c0_70] : memref<1x1xf32, #tpu.memory_space<vmem>>, vector<1x1xf32>
      tpu.vector_store %arg6[%c0_69, %c0_70], %130 {strides = array<i32>} : memref<1x1xf32, #tpu.memory_space<vmem>>, vector<1x1xf32>,
    } else {
    }
    return
  }
  func.func @transform_0(%arg0: i32, %arg1: memref<8xi32, #tpu.memory_space<smem>>, %arg2: memref<8xi32, #tpu.memory_space<smem>>) -> (i32, i32) {
    %c0_i32 = arith.constant 0 : i32
    %c0_i32_0 = arith.constant 0 : i32
    %c0_i32_1 = arith.constant 0 : i32
    return %c0_i32, %c0_i32_0 : i32, i32
  }
  func.func @transform_1(%arg0: i32, %arg1: memref<8xi32, #tpu.memory_space<smem>>, %arg2: memref<8xi32, #tpu.memory_space<smem>>) -> (i32, i32) {
    %c0_i32 = arith.constant 0 : i32
    %c0_i32_0 = arith.constant 0 : i32
    %c0_i32_1 = arith.constant 0 : i32
    return %c0_i32, %c0_i32_0 : i32, i32
  }
  func.func @transform_2(%arg0: i32, %arg1: memref<8xi32, #tpu.memory_space<smem>>, %arg2: memref<8xi32, #tpu.memory_space<smem>>) -> (i32, i32) {
    %c0_i32 = arith.constant 0 : i32
    %c0_i32_0 = arith.constant 0 : i32
    return %arg0, %c0_i32 : i32, i32
  }
  func.func @transform_3(%arg0: i32, %arg1: memref<8xi32, #tpu.memory_space<smem>>, %arg2: memref<8xi32, #tpu.memory_space<smem>>) -> (i32, i32) {
    %c0_i32 = arith.constant 0 : i32
    %c0_i32_0 = arith.constant 0 : i32
    %c0_i32_1 = arith.constant 0 : i32
    return %c0_i32, %c0_i32_0 : i32, i32
  }
}

</mosaic_0001>

<llo_original>
// kernel: tpu_custom_call.1
$region0: #{tpu_custom_call.1}
  #allocation0 [shape = 'u32[]', space=smem, size = 0x4, offset = 0x4, fixed_abs, tag = 'smem constant byte address 0x4 - core index']
  #allocation1 [shape = 'u32[144,128]{1,0:T(1,128)}', space=vmem, size = 0x12000, scoped, tag = 'internal scratch']
  #allocation2 [shape = 'f32[8,128]{1,0:T(8,128)}', space=vmem, size = 0x1000, scoped, tag = 'scratch operand']
  #allocation3 [shape = 'f32[8,128]{1,0:T(8,128)}', space=vmem, size = 0x1000, scoped, tag = 'scratch operand']
  #allocation4 [shape = 'f32[1,1]{1,0:T(1,128)}', space=vmem, size = 0x200, scoped, tag = 'scratch operand']
  #allocation5 [shape = 's32[1]{0}', space=sflag, size = 0x4, scoped, tag = 'scoped memory for tpu_custom_call.1']
  #allocation6 [shape = 'u8[512]{0}', space=smem, size = 0x200, scoped, tag = 'prefetched SMEM operand 0']
  #allocation7 [shape = 'u8[512]{0}', space=smem, size = 0x200, scoped, tag = 'prefetched SMEM operand 1']
  %s0 = inlined_call_operand.hbm [shape: s32[8], index: 0, kind: input, shape index: {}]
  %s1 = inlined_call_operand.hbm [shape: s32[8], index: 1, kind: input, shape index: {}]
  %s2 = inlined_call_operand.vmem [shape: f32[8,128], index: 2, kind: input, shape index: {}]
  %s3 = inlined_call_operand.vmem [shape: f32[8,128], index: 3, kind: input, shape index: {}]
  %s4 = inlined_call_operand.vmem [shape: f32[8,1], index: 4, kind: input, shape index: {}]
  %s5 = inlined_call_operand.hbm [shape: f32[1,1], index: 5, kind: output, shape index: {}]
  %s6 = sld [smem:[#allocation0]]
  $region30: #{tpu_custom_call.1} parent=0
    _
  %s8 = ssub.s32 1, %s6
  %s9 = scalar_select 0, %s8, %s6
  %11 = dma.hbm_to_smem %s0, 16, [#allocation6], [#allocation5]
  %13 = dma.hbm_to_smem %s1, 16, [#allocation7], [#allocation5]
  %14 = dma.done [#allocation5], 32
  %15 = sfence
  $region1: #{tpu_custom_call.1} parent=0
    #allocation8 [shape = 'u8[512]{0}', space=vmem, size = 0x400, scoped, tag = 'output window, operand 0, single buffered']
    #allocation9 [shape = 's32[1]{0}', space=sflag, size = 0x4, scoped, tag = 'scoped memory for tpu_custom_call.1']
    %16 = vsyncpa [#allocation9], 0
    // Predicated region
    $region2: #{tpu_custom_call.1} parent=1 // pred_check
      _
    $region3: #{tpu_custom_call.1} parent=1 // pred_check_branch
      %18 = sbr.rel (0) target = $region5
    $region4: #{tpu_custom_call.1} parent=1 // pred_region
      _
    $region5: #{tpu_custom_call.1} parent=1 // pred_fallthru
      _
    // Predicated region
    $region6: #{tpu_custom_call.1} parent=1 // pred_check
      _
    $region7: #{tpu_custom_call.1} parent=1 // pred_check_branch
      %20 = sbr.rel (0) target = $region9
    $region8: #{tpu_custom_call.1} parent=1 // pred_region
      _
    $region9: #{tpu_custom_call.1} parent=1 // pred_fallthru
      _
    // Predicated region
    $region10: #{tpu_custom_call.1} parent=1 // pred_check
      _
    $region11: #{tpu_custom_call.1} parent=1 // pred_check_branch
      %22 = sbr.rel (0) target = $region13
    $region12: #{tpu_custom_call.1} parent=1 // pred_region
      _
    $region13: #{tpu_custom_call.1} parent=1 // pred_fallthru
      _
    %s23 = smul.u32 0, 8
    %p24 = scmp.eq.s32.totalorder 0, 0
    // Predicated region
    $region14: #{tpu_custom_call.1} parent=1 // pred_check
      %p25 = pneg %p24
    $region15: #{tpu_custom_call.1} parent=1 // pred_check_branch
      %27 = sbr.rel (%p25) target = $region17
    $region16: #{tpu_custom_call.1} parent=1 // pred_region
      %vm28 = vcmask 0
      %29 = vst.msk [vmem:[#allocation4] sm:$0x1] %vm28, 0.0
    $region17: #{tpu_custom_call.1} parent=1 // pred_fallthru
      _
    %s30 = sld [smem:[#allocation6 + %s23]]
    %s31 = sld [smem:[#allocation7 + %s23]]
    %s32 = scalar_lea.vmem %s2, %s30
    %v33 = vld [vmem:[%s32] sm:$0x1]
    %34 = vst [vmem:[#allocation2] sm:$0x1] %v33
    %s35 = scalar_lea.vmem %s3, %s31
    %v36 = vld [vmem:[%s35] sm:$0x1]
    %37 = vst [vmem:[#allocation3] sm:$0x1] %v36
    %s38 = sadd.s32 %s23, 1
    %s39 = sld [smem:[#allocation6 + %s38]]
    %s40 = sld [smem:[#allocation7 + %s38]]
    %s41 = scalar_lea.vmem %s2, %s39
    %v42 = vld [vmem:[%s41] sm:$0x1]
    %43 = vst [vmem:[#allocation2 + $0x1] sm:$0x1] %v42
    %s44 = scalar_lea.vmem %s3, %s40
    %v45 = vld [vmem:[%s44] sm:$0x1]
    %46 = vst [vmem:[#allocation3 + $0x1] sm:$0x1] %v45
    %s47 = sadd.s32 %s23, 2
    %s48 = sld [smem:[#allocation6 + %s47]]
    %s49 = sld [smem:[#allocation7 + %s47]]
    %s50 = scalar_lea.vmem %s2, %s48
    %v51 = vld [vmem:[%s50] sm:$0x1]
    %52 = vst [vmem:[#allocation2 + $0x2] sm:$0x1] %v51
    %s53 = scalar_lea.vmem %s3, %s49
    %v54 = vld [vmem:[%s53] sm:$0x1]
    %55 = vst [vmem:[#allocation3 + $0x2] sm:$0x1] %v54
    %s56 = sadd.s32 %s23, 3
    %s57 = sld [smem:[#allocation6 + %s56]]
    %s58 = sld [smem:[#allocation7 + %s56]]
    %s59 = scalar_lea.vmem %s2, %s57
    %v60 = vld [vmem:[%s59] sm:$0x1]
    %61 = vst [vmem:[#allocation2 + $0x3] sm:$0x1] %v60
    %s62 = scalar_lea.vmem %s3, %s58
    %v63 = vld [vmem:[%s62] sm:$0x1]
    %64 = vst [vmem:[#allocation3 + $0x3] sm:$0x1] %v63
    %s65 = sadd.s32 %s23, 4
    %s66 = sld [smem:[#allocation6 + %s65]]
    %s67 = sld [smem:[#allocation7 + %s65]]
    %s68 = scalar_lea.vmem %s2, %s66
    %v69 = vld [vmem:[%s68] sm:$0x1]
    %70 = vst [vmem:[#allocation2 + $0x4] sm:$0x1] %v69
    %s71 = scalar_lea.vmem %s3, %s67
    %v72 = vld [vmem:[%s71] sm:$0x1]
    %73 = vst [vmem:[#allocation3 + $0x4] sm:$0x1] %v72
    %s74 = sadd.s32 %s23, 5
    %s75 = sld [smem:[#allocation6 + %s74]]
    %s76 = sld [smem:[#allocation7 + %s74]]
    %s77 = scalar_lea.vmem %s2, %s75
    %v78 = vld [vmem:[%s77] sm:$0x1]
    %79 = vst [vmem:[#allocation2 + $0x5] sm:$0x1] %v78
    %s80 = scalar_lea.vmem %s3, %s76
    %v81 = vld [vmem:[%s80] sm:$0x1]
    %82 = vst [vmem:[#allocation3 + $0x5] sm:$0x1] %v81
    %s83 = sadd.s32 %s23, 6
    %s84 = sld [smem:[#allocation6 + %s83]]
    %s85 = sld [smem:[#allocation7 + %s83]]
    %s86 = scalar_lea.vmem %s2, %s84
    %v87 = vld [vmem:[%s86] sm:$0x1]
    %88 = vst [vmem:[#allocation2 + $0x6] sm:$0x1] %v87
    %s89 = scalar_lea.vmem %s3, %s85
    %v90 = vld [vmem:[%s89] sm:$0x1]
    %91 = vst [vmem:[#allocation3 + $0x6] sm:$0x1] %v90
    %s92 = sadd.s32 %s23, 7
    %s93 = sld [smem:[#allocation6 + %s92]]
    %s94 = sld [smem:[#allocation7 + %s92]]
    %s95 = scalar_lea.vmem %s2, %s93
    %v96 = vld [vmem:[%s95] sm:$0x1]
    %97 = vst [vmem:[#allocation2 + $0x7] sm:$0x1] %v96
    %s98 = scalar_lea.vmem %s3, %s94
    %v99 = vld [vmem:[%s98] sm:$0x1]
    %100 = vst [vmem:[#allocation3 + $0x7] sm:$0x1] %v99
    %v101 = vld [vmem:[#allocation2] sm:$0xff]
    %v102 = vld [vmem:[#allocation3] sm:$0xff]
    %v103 = vmul.f32 %v101, %v102
    %104 = vadd.xlane.f32.xlu0 %v103
    %v105 = vpop.xlane.xlu0 %104
    %v106 = vsub.f32 0.0, %v105
    %v107 = vmax.f32 %v106, 0.0
    %v108 = vand.u32 2147483647, %v105
    %v109 = vsub.f32 0.0, %v108
    %v110 = vmul.f32 %v109, 1.442695
    %v111 = vpow.pop %v110
    %v112 = vadd.f32 %v111, 1.0
    %v113 = vlog2.pop %v112
    %v114 = vmul.f32 %v113, 0.6931472
    %v115 = vadd.f32 %v107, %v114
    %v116 = vld [vmem:[#allocation4] sm:$0x1]
    %v117 = vld [vmem:[%s4] sm:$0xff]
    %v118 = vmul.f32 %v115, %v117
    %vm119 = vcmask 7168
    %v120 = vsel %vm119, %v118, 0.0
    %121 = vadd.xlane.f32.xlu0 %v120
    %v122 = vpop.xlane.xlu0 %121
    %v123 = vrot.slane %v122, 4
    %v124 = vadd.f32 %v122, %v123
    %v125 = vrot.slane %v124, 2
    %v126 = vadd.f32 %v124, %v125
    %v127 = vrot.slane %v126, 1
    %v128 = vadd.f32 %v126, %v127
    %s129 = vtos %v128
    %v130 = vstv %s129
    %v131 = vadd.f32 %v116, %v130
    %vm132 = vcmask 0
    %133 = vst.msk [vmem:[#allocation4] sm:$0x1] %vm132, %v131
    // Predicated region
    $region18: #{tpu_custom_call.1} parent=1 // pred_check
      %p134 = pneg %p24
    $region19: #{tpu_custom_call.1} parent=1 // pred_check_branch
      %136 = sbr.rel (%p134) target = $region21
    $region20: #{tpu_custom_call.1} parent=1 // pred_region
      %v137 = vld [vmem:[#allocation4] sm:$0x1]
      %138 = vst.msk [vmem:[#allocation8] sm:$0x1] %vm132, %v137
    $region21: #{tpu_custom_call.1} parent=1 // pred_fallthru
      _
    // Predicated region
    $region22: #{tpu_custom_call.1} parent=1 // pred_check
      _
    $region23: #{tpu_custom_call.1} parent=1 // pred_check_branch
      %140 = sbr.rel (0) target = $region25
    $region24: #{tpu_custom_call.1} parent=1 // pred_region
      %s142 = ssub.s32 16, 16
      %143 = vsyncadd [#allocation9], %s142
      %s145 = sshll.u32 [#allocation8], 4
      %s146 = int_to_ptr.vmem [resolvable:$true] %s145
      %148 = dma.vmem_to_hbm [thread:$0]  %s146, 16, %s5, [#allocation9]
    $region25: #{tpu_custom_call.1} parent=1 // pred_fallthru
      _
    // Predicated region
    $region26: #{tpu_custom_call.1} parent=1 // pred_check
      _
    $region27: #{tpu_custom_call.1} parent=1 // pred_check_branch
      %150 = sbr.rel (0) target = $region29
    $region28: #{tpu_custom_call.1} parent=1 // pred_region
      %151 = dma.done [#allocation9], 16
    $region29: #{tpu_custom_call.1} parent=1 // pred_fallthru
      _
    %152 = vsyncpa [#allocation9], 1

</llo_original>
